<compile_context>
chip_gen: v5e
topology: v5e:2x2
jax: 0.10.0
libtpu: 0.0.40
codegen_flags: <defaults>
</compile_context>

<pallas_src>
import functools
import math

import jax
import jax.numpy as jnp
from jax import lax
from jax.experimental import pallas as pl
from jax.experimental.pallas import tpu as pltpu


def _round_up(a, m):
    return (a + m - 1) // m * m


def _gelu_tanh(x):
    # Exactly the module's GeLU formula.
    return 0.5 * x * (1.0 + jnp.tanh(x * 0.7978845608 * (1.0 + 0.044715 * x * x)))


def _linear_wn_kernel(x_ref, vt_ref, s_ref, b_ref, o_ref, *, activations,
                      epilogue_dtype):
    # x_ref : (bm, I)  bf16 rows of the flattened input
    # vt_ref: (I, bn)  bf16 weight_v, pre-transposed + pre-cast at param prep
    # s_ref : (1, bn)  f32  precomputed weight-norm scale g/||v|| (lane-dense)
    # b_ref : (1, bn)  f32  bias (lane-dense)
    # MXU matmul: bf16 inputs, f32 accumulation.
    y = lax.dot_general(
        x_ref[...], vt_ref[...],
        (((1,), (0,)), ((), ())),
        preferred_element_type=jnp.float32)                     # (bm, bn) f32

    # Fold weight-norm scale + bias after the matmul (pure VPU broadcast FMA).
    y = y * s_ref[...] + b_ref[...]
    if activations:
        # epilogue_dtype=bf16 uses the bf16 VPU/EUP path on v6e/v7x.
        y = _gelu_tanh(y.astype(epilogue_dtype))
    o_ref[...] = y.astype(o_ref.dtype)


def prepare_linear_wn_params(weight_v, weight_g, bias,
                             *, weight_dtype=jnp.bfloat16):
    """One-time parameter prep (do NOT call per forward).

    Returns (vt, scale_row, bias_row):
      vt        : (I, O) weight_v transposed, cast to bf16 once.
      scale_row : (1, O) f32  g / ||v_row||_2  (computed in f32 from f32 v).
      bias_row  : (1, O) f32  bias.
    """
    v = jnp.asarray(weight_v, jnp.float32)                       # (O, I)
    vt = v.T.astype(weight_dtype)                                # (I, O) bf16
    norm = jnp.sqrt(jnp.sum(v * v, axis=1))                      # (O,) f32
    scale_row = (jnp.asarray(weight_g, jnp.float32) / norm).reshape(1, -1)
    bias_row = jnp.asarray(bias, jnp.float32).reshape(1, -1)
    return vt, scale_row, bias_row


def linear_weight_norm(x, params, *, activations=False,
                       out_dtype=jnp.bfloat16,
                       epilogue_dtype=jnp.float32,
                       block_m=512, block_n=1024):
    """Forward pass of the weight-normalized Linear (+ optional GeLU)."""
    vt, scale_row, bias_row = params
    in_features, out_features = vt.shape
    *lead, in_features_x = x.shape
    assert in_features_x == in_features, "in_features mismatch"

    n = math.prod(lead) if lead else 1
    # Feed x in bf16 (single cast here, none inside the kernel).
    x2 = jnp.reshape(x, (n, in_features)).astype(vt.dtype)

    # Row-tile plan: 16-aligned (bf16 sublane pack); split into >= 2 steps for
    # mid/large batches so v7x's second TensorCore gets work on the
    # "parallel" row axis.
    n_pad = _round_up(max(n, 1), 16)
    if n_pad != n:
        x2 = jnp.pad(x2, ((0, n_pad - n), (0, 0)))
    if n_pad <= 256:
        bm = n_pad                                   # single row step
    else:
        bm = min(block_m, _round_up(pl.cdiv(n_pad, 2), 128))

    # Output-feature tiling: lane-dense multiple of 128 for large O.
    bn = out_features if out_features <= 2048 else block_n

    grid = (pl.cdiv(n_pad, bm), pl.cdiv(out_features, bn))

    # Explicit VMEM budget from the actual tile plan (double buffers),
    # capped so the plan stays inside v7x's 64 MiB physical VMEM.
    wbytes = jnp.dtype(vt.dtype).itemsize
    obytes = jnp.dtype(out_dtype).itemsize
    need = (2 * bm * in_features * wbytes          # x double-buffer
            + 2 * in_features * bn * wbytes        # weight double-buffer
            + 2 * bm * bn * obytes                 # out double-buffer
            + 4 * bn * 4 * 2)                      # scale/bias rows (f32)
    vmem_limit = int(min(64 * 2**20, max(32 * 2**20, need * 3 // 2 + (1 << 20))))

    kernel = functools.partial(_linear_wn_kernel, activations=activations,
                               epilogue_dtype=epilogue_dtype)
    out = pl.pallas_call(
        kernel,
        out_shape=jax.ShapeDtypeStruct((n_pad, out_features), out_dtype),
        grid=grid,
        in_specs=[
            pl.BlockSpec((bm, in_features), lambda i, j: (i, 0)),   # x rows (bf16)
            pl.BlockSpec((in_features, bn), lambda i, j: (0, j)),   # v^T (bf16)
            pl.BlockSpec((1, bn), lambda i, j: (0, j)),             # scale (f32)
            pl.BlockSpec((1, bn), lambda i, j: (0, j)),             # bias  (f32)
        ],
        out_specs=pl.BlockSpec((bm, bn), lambda i, j: (i, j)),
        compiler_params=pltpu.CompilerParams(
            dimension_semantics=("parallel", "parallel"),
            vmem_limit_bytes=vmem_limit),
    )(x2, vt, scale_row, bias_row)

    out = out[:n]
    return out.reshape(*lead, out_features)


def linear_weight_norm_ref(x, weight_v, weight_g, bias, *, activations=False):
    # Pure-JAX reference mirroring the PyTorch module exactly (f32).
    norm = jnp.sqrt(jnp.sum(weight_v * weight_v, axis=1, keepdims=True))   # (O,1)
    w = weight_g.reshape(-1, 1) * weight_v / norm                           # (O,I)
    y = x @ w.T + bias
    if activations:
        y = 0.5 * y * (1.0 + jnp.tanh(y * 0.7978845608 * (1.0 + 0.044715 * y * y)))
    return y


if __name__ == "__main__":
    # Small shapes implied by the module: batch=2, seq=8, hidden(in)=32.
    # out_features chosen as 128 so the output store is lane-dense.
    B, L, IN, OUT = 2, 8, 32, 128

    key = jax.random.PRNGKey(0)
    kx, kv, kg = jax.random.split(key, 3)

    x = jax.random.normal(kx, (B, L, IN), dtype=jnp.float32)
    # nn.init.normal_(weight, std=sqrt(2/in_features)) for activations=True.
    weight_v = jax.random.normal(kv, (OUT, IN), dtype=jnp.float32) * math.sqrt(2.0 / IN)
    # weight_norm init sets g = ||v_row||; perturb it so the normalization
    # path is genuinely exercised (g is a free learnable parameter in general).
    weight_g = jnp.sqrt(jnp.sum(weight_v * weight_v, axis=1)) * (
        1.0 + 0.1 * jax.random.normal(kg, (OUT,), dtype=jnp.float32))
    bias = jnp.zeros((OUT,), jnp.float32)   # nn.init.zeros_(bias)

    # One-time parameter prep (transpose + bf16 cast + f32 scale precompute).
    params = prepare_linear_wn_params(weight_v, weight_g, bias)

    # Path 1: activations=True (GeLU epilogue), bf16 output.
    y = linear_weight_norm(x, params, activations=True)
    jax.block_until_ready(y)
    y_ref = linear_weight_norm_ref(x, weight_v, weight_g, bias, activations=True)
    assert y.shape == y_ref.shape
    y32 = y.astype(jnp.float32)
    # bf16 MXU inputs + bf16 output -> ~1e-2 level agreement at IN=32.
    assert jnp.allclose(y32, y_ref, atol=6e-2, rtol=5e-2), float(
        jnp.max(jnp.abs(y32 - y_ref)))

    # Path 2: plain weight-normalized linear (no GeLU), f32 output.
    y2 = linear_weight_norm(x, params, activations=False, out_dtype=jnp.float32)
    jax.block_until_ready(y2)
    y2_ref = linear_weight_norm_ref(x, weight_v, weight_g, bias, activations=False)
    assert jnp.allclose(y2, y2_ref, atol=6e-2, rtol=5e-2), float(
        jnp.max(jnp.abs(y2 - y2_ref)))

    print("KERNEL_OK")
</pallas_src>

<mosaic_0001>
module attributes {stable_mosaic.version = 11 : i64} {
  func.func @_linear_wn_kernel(%arg0: i32, %arg1: i32, %arg2: memref<16x32xbf16, #tpu.memory_space<vmem>>, %arg3: memref<32x128xbf16, #tpu.memory_space<vmem>>, %arg4: memref<1x128xf32, #tpu.memory_space<vmem>>, %arg5: memref<1x128xf32, #tpu.memory_space<vmem>>, %arg6: memref<16x128xbf16, #tpu.memory_space<vmem>>) attributes {dimension_semantics = [#tpu.dimension_semantics<parallel>, #tpu.dimension_semantics<parallel>], iteration_bounds = array<i64: 1, 1>, scalar_prefetch = 0 : i64, scratch_operands = 0 : i64, tpu.core_type = #tpu.core_type<tc>, window_params = [{transform_indices = @transform_0, window_bounds = array<i64: 16, 32>}, {transform_indices = @transform_1, window_bounds = array<i64: 32, 128>}, {transform_indices = @transform_2, window_bounds = array<i64: 1, 128>}, {transform_indices = @transform_3, window_bounds = array<i64: 1, 128>}, {transform_indices = @transform_4, window_bounds = array<i64: 16, 128>}]} {
    %c0 = arith.constant 0 : index
    %c0_0 = arith.constant 0 : index
    %0 = vector.load %arg2[%c0, %c0_0] : memref<16x32xbf16, #tpu.memory_space<vmem>>, vector<16x32xbf16>
    %c0_1 = arith.constant 0 : index
    %c0_2 = arith.constant 0 : index
    %1 = vector.load %arg3[%c0_1, %c0_2] : memref<32x128xbf16, #tpu.memory_space<vmem>>, vector<32x128xbf16>
    %cst = arith.constant dense<0.000000e+00> : vector<16x128xf32>
    %2 = tpu.matmul %0, %1, %cst {dimension_numbers = #tpu.dot_dimension_numbers<[1], [0], [0], [1], [0, 0, 1, 1], [], []>} : vector<16x32xbf16>, vector<32x128xbf16>, vector<16x128xf32> -> vector<16x128xf32>
    %c0_3 = arith.constant 0 : index
    %c0_4 = arith.constant 0 : index
    %3 = vector.load %arg4[%c0_3, %c0_4] : memref<1x128xf32, #tpu.memory_space<vmem>>, vector<1x128xf32>
    %4 = vector.broadcast %3 : vector<1x128xf32> to vector<16x128xf32>
    %5 = arith.mulf %2, %4 : vector<16x128xf32>
    %c0_5 = arith.constant 0 : index
    %c0_6 = arith.constant 0 : index
    %6 = vector.load %arg5[%c0_5, %c0_6] : memref<1x128xf32, #tpu.memory_space<vmem>>, vector<1x128xf32>
    %7 = vector.broadcast %6 : vector<1x128xf32> to vector<16x128xf32>
    %8 = arith.addf %5, %7 : vector<16x128xf32>
    %cst_7 = arith.constant 5.000000e-01 : f32
    %9 = vector.broadcast %cst_7 : f32 to vector<16x128xf32>
    %10 = arith.mulf %9, %8 : vector<16x128xf32>
    %cst_8 = arith.constant 0.797884583 : f32
    %11 = vector.broadcast %cst_8 : f32 to vector<16x128xf32>
    %12 = arith.mulf %8, %11 : vector<16x128xf32>
    %cst_9 = arith.constant 4.471500e-02 : f32
    %13 = vector.broadcast %cst_9 : f32 to vector<16x128xf32>
    %14 = arith.mulf %13, %8 : vector<16x128xf32>
    %15 = arith.mulf %14, %8 : vector<16x128xf32>
    %cst_10 = arith.constant 1.000000e+00 : f32
    %16 = vector.broadcast %cst_10 : f32 to vector<16x128xf32>
    %17 = arith.addf %16, %15 : vector<16x128xf32>
    %18 = arith.mulf %12, %17 : vector<16x128xf32>
    %19 = math.tanh %18 : vector<16x128xf32>
    %cst_11 = arith.constant 1.000000e+00 : f32
    %20 = vector.broadcast %cst_11 : f32 to vector<16x128xf32>
    %21 = arith.addf %20, %19 : vector<16x128xf32>
    %22 = arith.mulf %10, %21 : vector<16x128xf32>
    %23 = arith.truncf %22 : vector<16x128xf32> to vector<16x128xbf16>
    %c0_12 = arith.constant 0 : index
    %c0_13 = arith.constant 0 : index
    %24 = vector.load %arg6[%c0_12, %c0_13] : memref<16x128xbf16, #tpu.memory_space<vmem>>, vector<16x128xbf16>
    tpu.vector_store %arg6[%c0_12, %c0_13], %23 {strides = array<i32>} : memref<16x128xbf16, #tpu.memory_space<vmem>>, vector<16x128xbf16>,
    return
  }
  func.func @transform_0(%arg0: i32, %arg1: i32) -> (i32, i32) {
    %c0_i32 = arith.constant 0 : i32
    %c0_i32_0 = arith.constant 0 : i32
    return %arg0, %c0_i32 : i32, i32
  }
  func.func @transform_1(%arg0: i32, %arg1: i32) -> (i32, i32) {
    %c0_i32 = arith.constant 0 : i32
    %c0_i32_0 = arith.constant 0 : i32
    return %c0_i32, %arg1 : i32, i32
  }
  func.func @transform_2(%arg0: i32, %arg1: i32) -> (i32, i32) {
    %c0_i32 = arith.constant 0 : i32
    %c0_i32_0 = arith.constant 0 : i32
    return %c0_i32, %arg1 : i32, i32
  }
  func.func @transform_3(%arg0: i32, %arg1: i32) -> (i32, i32) {
    %c0_i32 = arith.constant 0 : i32
    %c0_i32_0 = arith.constant 0 : i32
    return %c0_i32, %arg1 : i32, i32
  }
  func.func @transform_4(%arg0: i32, %arg1: i32) -> (i32, i32) {
    %c0_i32 = arith.constant 0 : i32
    return %arg0, %arg1 : i32, i32
  }
}

</mosaic_0001>

<llo_original>
// kernel: tpu_custom_call.1
$region0: #{tpu_custom_call.1}
  #allocation0 [shape = 'u32[]', space=smem, size = 0x4, offset = 0x4, fixed_abs, tag = 'smem constant byte address 0x4 - core index']
  #allocation1 [shape = 'u32[72,128]{1,0:T(1,128)}', space=vmem, size = 0x9000, scoped, tag = 'internal scratch']
  %s0 = inlined_call_operand.hbm [shape: bf16[16,32], index: 0, kind: input, shape index: {}]
  %s1 = inlined_call_operand.hbm [shape: bf16[32,128], index: 1, kind: input, shape index: {}]
  %s2 = inlined_call_operand.vmem [shape: f32[1,128], index: 2, kind: input, shape index: {}]
  %s3 = inlined_call_operand.vmem [shape: f32[1,128], index: 3, kind: input, shape index: {}]
  %s4 = inlined_call_operand.hbm [shape: bf16[16,128], index: 4, kind: output, shape index: {}]
  %s5 = sld [smem:[#allocation0]]
  $region34: #{tpu_custom_call.1} parent=0
    _
  %s7 = ssub.s32 1, %s5
  %s8 = scalar_select 0, %s7, %s5
  $region1: #{tpu_custom_call.1} parent=0
    #allocation2 [shape = 'u8[4096]{0}', space=vmem, size = 0x1000, scoped, tag = 'input window, operand 0, single buffered']
    #allocation3 [shape = 's32[1]{0}', space=sflag, size = 0x4, scoped, tag = 'scoped memory for tpu_custom_call.1']
    #allocation4 [shape = 's32[1]{0}', space=sflag, size = 0x4, scoped, tag = 'scoped memory for tpu_custom_call.1']
    #allocation5 [shape = 'u8[8192]{0}', space=vmem, size = 0x2000, scoped, tag = 'input window, operand 1, single buffered']
    #allocation6 [shape = 's32[1]{0}', space=sflag, size = 0x4, scoped, tag = 'scoped memory for tpu_custom_call.1']
    #allocation7 [shape = 'u8[4096]{0}', space=vmem, size = 0x1000, scoped, tag = 'output window, operand 0, single buffered']
    %9 = vsyncpa [#allocation3], 0
    %10 = vsyncpa [#allocation6], 0
    %11 = vsyncpa [#allocation4], 0
    // Predicated region
    $region2: #{tpu_custom_call.1} parent=1 // pred_check
      _
    $region3: #{tpu_custom_call.1} parent=1 // pred_check_branch
      %13 = sbr.rel (0) target = $region5
    $region4: #{tpu_custom_call.1} parent=1 // pred_region
      %15 = vsyncadd [#allocation3], 0
      %s16 = sshll.u32 %s0, 4
      %s17 = int_to_ptr.hbm [resolvable:$true] %s16
      %s18 = sshll.u32 [#allocation2], 4
      %s19 = int_to_ptr.vmem [resolvable:$true] %s18
      %24 = dma.hbm_to_vmem [thread:$0]  %s17, 128, %s19, [#allocation3], 64, 64, 4
    $region5: #{tpu_custom_call.1} parent=1 // pred_fallthru
      _
    // Predicated region
    $region6: #{tpu_custom_call.1} parent=1 // pred_check
      _
    $region7: #{tpu_custom_call.1} parent=1 // pred_check_branch
      %26 = sbr.rel (0) target = $region9
    $region8: #{tpu_custom_call.1} parent=1 // pred_region
      %28 = vsyncadd [#allocation6], 0
      %s29 = sshll.u32 %s1, 4
      %s30 = int_to_ptr.hbm [resolvable:$true] %s29
      %s31 = sshll.u32 [#allocation5], 4
      %s32 = int_to_ptr.vmem [resolvable:$true] %s31
      %37 = dma.hbm_to_vmem [thread:$0]  %s30, 256, %s32, [#allocation6], 64, 64, 4
    $region9: #{tpu_custom_call.1} parent=1 // pred_fallthru
      _
    // Predicated region
    $region10: #{tpu_custom_call.1} parent=1 // pred_check
      _
    $region11: #{tpu_custom_call.1} parent=1 // pred_check_branch
      %39 = sbr.rel (0) target = $region13
    $region12: #{tpu_custom_call.1} parent=1 // pred_region
      _
    $region13: #{tpu_custom_call.1} parent=1 // pred_fallthru
      _
    // Predicated region
    $region14: #{tpu_custom_call.1} parent=1 // pred_check
      _
    $region15: #{tpu_custom_call.1} parent=1 // pred_check_branch
      %41 = sbr.rel (0) target = $region17
    $region16: #{tpu_custom_call.1} parent=1 // pred_region
      _
    $region17: #{tpu_custom_call.1} parent=1 // pred_fallthru
      _
    // Predicated region
    $region18: #{tpu_custom_call.1} parent=1 // pred_check
      _
    $region19: #{tpu_custom_call.1} parent=1 // pred_check_branch
      %43 = sbr.rel (0) target = $region21
    $region20: #{tpu_custom_call.1} parent=1 // pred_region
      %45 = dma.done [#allocation3], 128
    $region21: #{tpu_custom_call.1} parent=1 // pred_fallthru
      _
    // Predicated region
    $region22: #{tpu_custom_call.1} parent=1 // pred_check
      _
    $region23: #{tpu_custom_call.1} parent=1 // pred_check_branch
      %47 = sbr.rel (0) target = $region25
    $region24: #{tpu_custom_call.1} parent=1 // pred_region
      %49 = dma.done [#allocation6], 256
    $region25: #{tpu_custom_call.1} parent=1 // pred_fallthru
      _
    %v51 = vld [vmem:[#allocation2] sm:$0xf]
    %v52 = vld [vmem:[#allocation2 + $0x4] sm:$0xf]
    %v53 = vld [vmem:[#allocation5] sm:$0xf]
    %v54 = vld [vmem:[#allocation5 + $0x4] sm:$0xf]
    %v55 = vld [vmem:[#allocation5 + $0x8] sm:$0xf]
    %v56 = vld [vmem:[#allocation5 + $0xc] sm:$0xf]
    %v59 = vunpack.c.l.b16 %v51
    %v60 = vunpack.c.l.b16 %v52
    %v61 = vpack.c.b16 %v60, %v59
    %v66 = vunpack.c.l.b16 %v53
    %v67 = vunpack.c.l.b16 %v54
    %v68 = vunpack.c.l.b16 %v55
    %v69 = vunpack.c.l.b16 %v56
    %v70 = vpack.c.b16 %v67, %v66
    %v71 = vpack.c.b16 %v69, %v68
    %vm74 = vcmask 261120
    %v76 = vsel %vm74, %v61, 0
    %78 = vmatpush.bf16.msra.mxu0 0
    %79 = vmatpush.bf16.msra.mxu0 0
    %80 = vmatpush.bf16.msra.mxu0 0
    %81 = vmatpush.bf16.msra.mxu0 0
    %82 = vmatpush.bf16.msra.mxu0 0
    %83 = vmatpush.bf16.msra.mxu0 0
    %84 = vmatpush.bf16.msra.mxu0 %v71
    %85 = vmatpush.bf16.msra.mxu0 %v70
    %86 = vmatmul.bf16.gmra.mxu0 %v76
    %v87 = vpop.f32.mrf.mxu0
    %v88 = vadd.f32 0.0, %v87
    %v89 = vpop.f32.mrf.mxu0
    %v90 = vadd.f32 0.0, %v89
    %91 = vdwg.mxu0
    %v92 = vld [vmem:[%s2] sm:$0x1]
    %v94 = vperm.slane %v92, 0
    %v96 = vmul.f32 %v88, %v94
    %v97 = vmul.f32 %v90, %v94
    %v98 = vld [vmem:[%s3] sm:$0x1]
    %v100 = vperm.slane %v98, 0
    %v102 = vadd.f32 %v96, %v100
    %v103 = vadd.f32 %v97, %v100
    %v104 = vmul.f32 %v102, 0.5
    %v105 = vmul.f32 %v103, 0.5
    %v106 = vmul.f32 %v102, 0.7978846
    %v107 = vmul.f32 %v103, 0.7978846
    %v108 = vmul.f32 %v102, 0.044715
    %v109 = vmul.f32 %v103, 0.044715
    %v110 = vmul.f32 %v108, %v102
    %v111 = vmul.f32 %v109, %v103
    %v112 = vadd.f32 %v110, 1.0
    %v113 = vadd.f32 %v111, 1.0
    %v114 = vmul.f32 %v106, %v112
    %v115 = vmul.f32 %v107, %v113
    %v116 = vtanh.pop %v114
    %v117 = vtanh.pop %v115
    %v118 = vadd.f32 %v116, 1.0
    %v119 = vadd.f32 %v117, 1.0
    %v120 = vmul.f32 %v104, %v118
    %v121 = vmul.f32 %v105, %v119
    %v122 = vpack.c.bf16 %v120, %v120
    %v123 = vpack.c.bf16 %v121, %v121
    %124 = vst [vmem:[#allocation7] sm:$0xf] %v122
    %125 = vst [vmem:[#allocation7 + $0x4] sm:$0xf] %v123
    // Predicated region
    $region26: #{tpu_custom_call.1} parent=1 // pred_check
      _
    $region27: #{tpu_custom_call.1} parent=1 // pred_check_branch
      %127 = sbr.rel (0) target = $region29
    $region28: #{tpu_custom_call.1} parent=1 // pred_region
      %129 = vsyncadd [#allocation4], 0
      %s130 = sshll.u32 [#allocation7], 4
      %s131 = int_to_ptr.vmem [resolvable:$true] %s130
      %s132 = sshll.u32 %s4, 4
      %s133 = int_to_ptr.hbm [resolvable:$true] %s132
      %138 = dma.vmem_to_hbm [thread:$0]  %s131, 128, %s133, [#allocation4], 64, 64, 4
    $region29: #{tpu_custom_call.1} parent=1 // pred_fallthru
      _
    // Predicated region
    $region30: #{tpu_custom_call.1} parent=1 // pred_check
      _
    $region31: #{tpu_custom_call.1} parent=1 // pred_check_branch
      %140 = sbr.rel (0) target = $region33
    $region32: #{tpu_custom_call.1} parent=1 // pred_region
      %142 = dma.done [#allocation4], 128
    $region33: #{tpu_custom_call.1} parent=1 // pred_fallthru
      _
    %143 = vsyncpa [#allocation3], 1
    %144 = vsyncpa [#allocation6], 1
    %145 = vsyncpa [#allocation4], 1

</llo_original>
